<compile_context>
chip_gen: v6e
topology: v6e:2x2x1
jax: 0.10.0
libtpu: 0.0.40
codegen_flags: <defaults>
</compile_context>

<pallas_src>
import math
import functools

import jax
import jax.numpy as jnp
from jax import lax
from jax.experimental import pallas as pl
from jax.experimental.pallas import tpu as pltpu

_VMEM_LIMIT = 32 * 1024 * 1024  # explicit scoped-VMEM budget, safe on v5e/v6e/v7x


def _qkv_proj_kernel(x_ref, w_ref, b_ref, qkv_ref):
    """Fused q/k/v projection over all B*S rows: (R, D_in) @ (D_in, Nt) + b."""
    acc = jnp.dot(x_ref[...], w_ref[...], preferred_element_type=jnp.float32)
    qkv_ref[...] = (acc + b_ref[...]).astype(qkv_ref.dtype)


def _attention_kernel(qkv_ref, o_ref, *, d_k, d_v_pad):
    """Scaled dot-product attention for one batch element.

    qkv_ref: (1, S, 2*d_k + d_v_pad) bf16, laid out [q | k | v_padded];
    the 1/sqrt(d_k) scale is already folded into the q columns.
    """
    qkv = qkv_ref[0]                              # (S, Nt) bf16
    q = qkv[:, :d_k]                              # (S, d_k), pre-scaled
    k = qkv[:, d_k:2 * d_k]                       # (S, d_k)
    v = qkv[:, 2 * d_k:2 * d_k + d_v_pad]         # (S, d_v_pad)

    # scores = q @ k^T without materializing k.T: contract last dims directly.
    s = lax.dot_general(q, k, dimension_numbers=(((1,), (1,)), ((), ())),
                        preferred_element_type=jnp.float32)        # (S, S) f32

    # Numerically stable softmax; all elementwise math stays f32 (v5e-friendly).
    s = s - jnp.max(s, axis=-1, keepdims=True)
    p = jnp.exp(s)
    p = p * pl.reciprocal(jnp.sum(p, axis=-1, keepdims=True), approx=True)

    # TODO(synk): for long sequences, tile K/V over a second "arbitrary" grid
    # axis with an online-softmax accumulator (flash pattern) instead of
    # materializing the full SxS scores block (VMEM hazard on v7x's 64 MiB).
    o = jnp.dot(p.astype(jnp.bfloat16), v, preferred_element_type=jnp.float32)
    o_ref[0] = o.astype(o_ref.dtype)              # lane-dense (S, 128) store


def attention_layer(x, wq, bq, wk, bk, wv, bv, *, d_k):
    """x: (B, S, D_in); wq/wk: (D_in, d_k); wv: (D_in, d_v); biases (1, d_out)."""
    B, S, D_in = x.shape
    d_v = wv.shape[1]
    d_v_pad = ((d_v + 127) // 128) * 128            # lane-dense output width
    n_tot = 2 * d_k + d_v_pad

    # Wrapper-side fusion: [Wq * scale | Wk | Wv zero-padded to 128 lanes].
    scale = 1.0 / math.sqrt(float(d_k))
    w_fused = jnp.concatenate(
        [wq * scale, wk, jnp.pad(wv, ((0, 0), (0, d_v_pad - d_v)))], axis=1)
    b_fused = jnp.concatenate(
        [bq * scale, bk, jnp.pad(bv, ((0, 0), (0, d_v_pad - d_v)))], axis=1)

    # bf16 MXU operands; accumulation stays f32 inside the kernels.
    x2d = x.astype(jnp.bfloat16).reshape(B * S, D_in)
    w_bf = w_fused.astype(jnp.bfloat16)
    b_f32 = b_fused.astype(jnp.float32)

    # --- kernel 1: fused projection over all B*S rows (one weight DMA stream) ---
    qkv2d = pl.pallas_call(
        _qkv_proj_kernel,
        out_shape=jax.ShapeDtypeStruct((B * S, n_tot), jnp.bfloat16),
        grid=(1,),
        in_specs=[
            pl.BlockSpec((B * S, D_in), lambda i: (0, 0)),   # x (all rows)
            pl.BlockSpec((D_in, n_tot), lambda i: (0, 0)),   # fused W
            pl.BlockSpec((1, n_tot), lambda i: (0, 0)),      # fused bias
        ],
        out_specs=pl.BlockSpec((B * S, n_tot), lambda i: (0, 0)),
        compiler_params=pltpu.CompilerParams(
            dimension_semantics=("arbitrary",),
            vmem_limit_bytes=_VMEM_LIMIT),
    )(x2d, w_bf, b_f32)

    # --- kernel 2: per-batch attention, batch axis parallel (v7x megacore) ---
    qkv3d = qkv2d.reshape(B, S, n_tot)
    out_pad = pl.pallas_call(
        functools.partial(_attention_kernel, d_k=d_k, d_v_pad=d_v_pad),
        out_shape=jax.ShapeDtypeStruct((B, S, d_v_pad), jnp.float32),
        grid=(B,),
        in_specs=[pl.BlockSpec((1, S, n_tot), lambda b: (b, 0, 0))],
        out_specs=pl.BlockSpec((1, S, d_v_pad), lambda b: (b, 0, 0)),
        compiler_params=pltpu.CompilerParams(
            dimension_semantics=("parallel",),
            vmem_limit_bytes=_VMEM_LIMIT),
    )(qkv3d)

    return out_pad[:, :, :d_v]


def reference_attention(x, wq, bq, wk, bk, wv, bv, *, d_k):
    q = x @ wq + bq
    k = x @ wk + bk
    v = x @ wv + bv
    s = jnp.einsum("bqd,bkd->bqk", q, k) / jnp.sqrt(jnp.float32(d_k))
    p = jax.nn.softmax(s, axis=-1)
    return jnp.einsum("bqk,bkd->bqd", p, v)


if __name__ == "__main__":
    # Small shapes consistent with the module's forward pass.
    B, S = 2, 8           # batch, sequence length
    d_in, d_k, d_v = 32, 64, 32

    key = jax.random.PRNGKey(0)
    kx, kq, kbq, kk, kbk, kv, kbv = jax.random.split(key, 7)

    # Deterministic init (matches nn.Linear's uniform(-1/sqrt(in), 1/sqrt(in))).
    bound = 1.0 / math.sqrt(d_in)
    x = jax.random.normal(kx, (B, S, d_in), dtype=jnp.float32)
    wq = jax.random.uniform(kq, (d_in, d_k), jnp.float32, -bound, bound)
    bq = jax.random.uniform(kbq, (1, d_k), jnp.float32, -bound, bound)
    wk = jax.random.uniform(kk, (d_in, d_k), jnp.float32, -bound, bound)
    bk = jax.random.uniform(kbk, (1, d_k), jnp.float32, -bound, bound)
    wv = jax.random.uniform(kv, (d_in, d_v), jnp.float32, -bound, bound)
    bv = jax.random.uniform(kbv, (1, d_v), jnp.float32, -bound, bound)

    out = attention_layer(x, wq, bq, wk, bk, wv, bv, d_k=d_k)
    out = jax.block_until_ready(out)

    ref = reference_attention(x, wq, bq, wk, bk, wv, bv, d_k=d_k)
    assert out.shape == (B, S, d_v)
    # bf16 MXU operands + approx reciprocal -> loosened tolerance vs f32 ref.
    assert jnp.allclose(out, ref, atol=2e-2, rtol=2e-2)

    print("KERNEL_OK")
</pallas_src>

<mosaic_0001>
module attributes {stable_mosaic.version = 11 : i64} {
  func.func @_qkv_proj_kernel(%arg0: i32, %arg1: memref<16x32xbf16, #tpu.memory_space<vmem>>, %arg2: memref<32x256xbf16, #tpu.memory_space<vmem>>, %arg3: memref<1x256xf32, #tpu.memory_space<vmem>>, %arg4: memref<16x256xbf16, #tpu.memory_space<vmem>>) attributes {dimension_semantics = [#tpu.dimension_semantics<arbitrary>], iteration_bounds = array<i64: 1>, scalar_prefetch = 0 : i64, scratch_operands = 0 : i64, tpu.core_type = #tpu.core_type<tc>, window_params = [{pipeline_mode = #tpu.pipeline_mode<synchronous>, transform_indices = @transform_0, window_bounds = array<i64: 16, 32>}, {pipeline_mode = #tpu.pipeline_mode<synchronous>, transform_indices = @transform_1, window_bounds = array<i64: 32, 256>}, {pipeline_mode = #tpu.pipeline_mode<synchronous>, transform_indices = @transform_2, window_bounds = array<i64: 1, 256>}, {pipeline_mode = #tpu.pipeline_mode<synchronous>, transform_indices = @transform_3, window_bounds = array<i64: 16, 256>}]} {
    %c0 = arith.constant 0 : index
    %c0_0 = arith.constant 0 : index
    %0 = vector.load %arg1[%c0, %c0_0] : memref<16x32xbf16, #tpu.memory_space<vmem>>, vector<16x32xbf16>
    %c0_1 = arith.constant 0 : index
    %c0_2 = arith.constant 0 : index
    %1 = vector.load %arg2[%c0_1, %c0_2] : memref<32x256xbf16, #tpu.memory_space<vmem>>, vector<32x256xbf16>
    %cst = arith.constant dense<0.000000e+00> : vector<16x256xf32>
    %2 = tpu.matmul %0, %1, %cst {dimension_numbers = #tpu.dot_dimension_numbers<[1], [0], [0], [1], [0, 0, 1, 1], [], []>} : vector<16x32xbf16>, vector<32x256xbf16>, vector<16x256xf32> -> vector<16x256xf32>
    %c0_3 = arith.constant 0 : index
    %c0_4 = arith.constant 0 : index
    %3 = vector.load %arg3[%c0_3, %c0_4] : memref<1x256xf32, #tpu.memory_space<vmem>>, vector<1x256xf32>
    %4 = vector.broadcast %3 : vector<1x256xf32> to vector<16x256xf32>
    %5 = arith.addf %2, %4 : vector<16x256xf32>
    %6 = arith.truncf %5 : vector<16x256xf32> to vector<16x256xbf16>
    %c0_5 = arith.constant 0 : index
    %c0_6 = arith.constant 0 : index
    %7 = vector.load %arg4[%c0_5, %c0_6] : memref<16x256xbf16, #tpu.memory_space<vmem>>, vector<16x256xbf16>
    tpu.vector_store %arg4[%c0_5, %c0_6], %6 {strides = array<i32>} : memref<16x256xbf16, #tpu.memory_space<vmem>>, vector<16x256xbf16>,
    return
  }
  func.func @transform_0(%arg0: i32) -> (i32, i32) {
    %c0_i32 = arith.constant 0 : i32
    %c0_i32_0 = arith.constant 0 : i32
    %c0_i32_1 = arith.constant 0 : i32
    return %c0_i32, %c0_i32_0 : i32, i32
  }
  func.func @transform_1(%arg0: i32) -> (i32, i32) {
    %c0_i32 = arith.constant 0 : i32
    %c0_i32_0 = arith.constant 0 : i32
    %c0_i32_1 = arith.constant 0 : i32
    return %c0_i32, %c0_i32_0 : i32, i32
  }
  func.func @transform_2(%arg0: i32) -> (i32, i32) {
    %c0_i32 = arith.constant 0 : i32
    %c0_i32_0 = arith.constant 0 : i32
    %c0_i32_1 = arith.constant 0 : i32
    return %c0_i32, %c0_i32_0 : i32, i32
  }
  func.func @transform_3(%arg0: i32) -> (i32, i32) {
    %c0_i32 = arith.constant 0 : i32
    %c0_i32_0 = arith.constant 0 : i32
    %c0_i32_1 = arith.constant 0 : i32
    return %c0_i32, %c0_i32_0 : i32, i32
  }
}

</mosaic_0001>

<llo_original>
// kernel: tpu_custom_call.1
$region0: #{tpu_custom_call.1}
  #allocation0 [shape = 'u32[]', space=smem, size = 0x4, offset = 0x4, fixed_abs, tag = 'smem constant byte address 0x4 - core index']
  #allocation1 [shape = 'u32[144,128]{1,0:T(1,128)}', space=vmem, size = 0x12000, scoped, tag = 'internal scratch']
  %s0 = inlined_call_operand.hbm [shape: bf16[16,32], index: 0, kind: input, shape index: {}]
  %s1 = inlined_call_operand.hbm [shape: bf16[32,256], index: 1, kind: input, shape index: {}]
  %s2 = inlined_call_operand.vmem [shape: f32[1,256], index: 2, kind: input, shape index: {}]
  %s3 = inlined_call_operand.hbm [shape: bf16[16,256], index: 3, kind: output, shape index: {}]
  %s4 = sld [smem:[#allocation0]]
  $region30: #{tpu_custom_call.1} parent=0
    _
  %s6 = ssub.s32 1, %s4
  %s7 = scalar_select 0, %s6, %s4
  $region1: #{tpu_custom_call.1} parent=0
    #allocation2 [shape = 'u8[4096]{0}', space=vmem, size = 0x1000, scoped, tag = 'input window, operand 0, single buffered']
    #allocation3 [shape = 's32[1]{0}', space=sflag, size = 0x4, scoped, tag = 'scoped memory for tpu_custom_call.1']
    #allocation4 [shape = 's32[1]{0}', space=sflag, size = 0x4, scoped, tag = 'scoped memory for tpu_custom_call.1']
    #allocation5 [shape = 'u8[16384]{0}', space=vmem, size = 0x4000, scoped, tag = 'input window, operand 1, single buffered']
    #allocation6 [shape = 's32[1]{0}', space=sflag, size = 0x4, scoped, tag = 'scoped memory for tpu_custom_call.1']
    #allocation7 [shape = 'u8[8192]{0}', space=vmem, size = 0x2000, scoped, tag = 'output window, operand 0, single buffered']
    %8 = vsyncpa [#allocation3], 0
    %9 = vsyncpa [#allocation6], 0
    %10 = vsyncpa [#allocation4], 0
    // Predicated region
    $region2: #{tpu_custom_call.1} parent=1 // pred_check
      _
    $region3: #{tpu_custom_call.1} parent=1 // pred_check_branch
      %12 = sbr.rel (0) target = $region5
    $region4: #{tpu_custom_call.1} parent=1 // pred_region
      %s14 = ssub.s32 128, 128
      %15 = vsyncadd [#allocation3], %s14
      %s16 = sshll.u32 [#allocation2], 4
      %s17 = int_to_ptr.vmem [resolvable:$true] %s16
      %22 = dma.hbm_to_vmem [thread:$0]  %s0, 128, %s17, [#allocation3], 64, 64, 4
    $region5: #{tpu_custom_call.1} parent=1 // pred_fallthru
      _
    // Predicated region
    $region6: #{tpu_custom_call.1} parent=1 // pred_check
      _
    $region7: #{tpu_custom_call.1} parent=1 // pred_check_branch
      %24 = sbr.rel (0) target = $region9
    $region8: #{tpu_custom_call.1} parent=1 // pred_region
      %s26 = ssub.s32 512, 512
      %27 = vsyncadd [#allocation6], %s26
      %s28 = sshll.u32 [#allocation5], 4
      %s29 = int_to_ptr.vmem [resolvable:$true] %s28
      %34 = dma.hbm_to_vmem [thread:$0]  %s1, 512, %s29, [#allocation6], 128, 128, 8
    $region9: #{tpu_custom_call.1} parent=1 // pred_fallthru
      _
    // Predicated region
    $region10: #{tpu_custom_call.1} parent=1 // pred_check
      _
    $region11: #{tpu_custom_call.1} parent=1 // pred_check_branch
      %36 = sbr.rel (0) target = $region13
    $region12: #{tpu_custom_call.1} parent=1 // pred_region
      _
    $region13: #{tpu_custom_call.1} parent=1 // pred_fallthru
      _
    // Predicated region
    $region14: #{tpu_custom_call.1} parent=1 // pred_check
      _
    $region15: #{tpu_custom_call.1} parent=1 // pred_check_branch
      %38 = sbr.rel (0) target = $region17
    $region16: #{tpu_custom_call.1} parent=1 // pred_region
      %39 = dma.done [#allocation3], 128
    $region17: #{tpu_custom_call.1} parent=1 // pred_fallthru
      _
    // Predicated region
    $region18: #{tpu_custom_call.1} parent=1 // pred_check
      _
    $region19: #{tpu_custom_call.1} parent=1 // pred_check_branch
      %41 = sbr.rel (0) target = $region21
    $region20: #{tpu_custom_call.1} parent=1 // pred_region
      %42 = dma.done [#allocation6], 512
    $region21: #{tpu_custom_call.1} parent=1 // pred_fallthru
      _
    %v44 = vld [vmem:[#allocation2] sm:$0xf]
    %v45 = vld [vmem:[#allocation2 + $0x4] sm:$0xf]
    %v46 = vld [vmem:[#allocation5] sm:$0xff]
    %v47 = vld [vmem:[#allocation5 + $0x8] sm:$0xff]
    %v48 = vld [vmem:[#allocation5 + $0x10] sm:$0xff]
    %v49 = vld [vmem:[#allocation5 + $0x18] sm:$0xff]
    %v50 = vld [vmem:[%s2] sm:$0x3]
    %v52 = vlaneseq
    %v53 = vshrl.u32 %v52, 7
    %v54 = vsub.s32 0, %v53
    %v55 = vrot.slane %v50, %v54
    %v56 = vlaneseq
    %v57 = vshrl.u32 %v56, 7
    %v58 = vsub.s32 1, %v57
    %v59 = vrot.slane %v50, %v58
    %v64 = vunpack.c.l.b16 %v44
    %v65 = vunpack.c.l.b16 %v45
    %v66 = vpack.c.b16 %v65, %v64
    %v71 = vunpack.c.l.b16 %v46
    %v72 = vunpack.c.h.b16 %v46
    %v73 = vunpack.c.l.b16 %v47
    %v74 = vunpack.c.h.b16 %v47
    %v75 = vunpack.c.l.b16 %v48
    %v76 = vunpack.c.h.b16 %v48
    %v77 = vunpack.c.l.b16 %v49
    %v78 = vunpack.c.h.b16 %v49
    %v79 = vpack.c.b16 %v73, %v71
    %v80 = vpack.c.b16 %v74, %v72
    %v81 = vpack.c.b16 %v77, %v75
    %v82 = vpack.c.b16 %v78, %v76
    %vm87 = vcmask 261120
    %v89 = vsel %vm87, %v66, 0
    %91 = vmatprep.subr.bf16.mxu0 0
    %92 = vmatpush1.bf16.msra.mxu0 0
    %93 = vmatprep.subr.bf16.mxu0 0
    %94 = vmatpush1.bf16.msra.mxu0 0
    %95 = vmatprep.subr.bf16.mxu0 0
    %96 = vmatpush1.bf16.msra.mxu0 0
    %97 = vmatprep.subr.bf16.mxu0 0
    %98 = vmatpush1.bf16.msra.mxu0 0
    %99 = vmatprep.subr.bf16.mxu0 0
    %100 = vmatpush1.bf16.msra.mxu0 0
    %101 = vmatprep.subr.bf16.mxu0 0
    %102 = vmatpush1.bf16.msra.mxu0 0
    %103 = vmatprep.subr.bf16.mxu0 %v82
    %104 = vmatpush1.bf16.msra.mxu0 %v81
    %105 = vmatprep.subr.bf16.mxu0 %v80
    %106 = vmatpush1.bf16.msra.mxu0 %v79
    %107 = vmatprep.subr.bf16.mxu0 0
    %108 = vmatpush2.bf16.msra.mxu0 0
    %109 = vmatprep.subr.bf16.mxu0 0
    %110 = vmatpush2.bf16.msra.mxu0 0
    %111 = vmatprep.subr.bf16.mxu0 0
    %112 = vmatpush2.bf16.msra.mxu0 0
    %113 = vmatprep.subr.bf16.mxu0 0
    %114 = vmatpush2.bf16.msra.mxu0 0
    %115 = vmatprep.subr.bf16.mxu0 0
    %116 = vmatpush2.bf16.msra.mxu0 0
    %117 = vmatprep.subr.bf16.mxu0 0
    %118 = vmatpush2.bf16.msra.mxu0 0
    %119 = vmatprep.subr.bf16.mxu0 0
    %120 = vmatpush2.bf16.msra.mxu0 0
    %121 = vmatprep.subr.bf16.mxu0 0
    %122 = vmatpush2.bf16.msra.mxu0 0
    %123 = vmatprep.mubr.bf16.mxu0 0
    %124 = vmatmul.mubr.bf16.gmra.mxu0 %v89
    %v125 = vpop.f32.mrf.mxu0
    %v126 = vadd.f32 %v55, %v125
    %v127 = vpop.f32.mrf.mxu0
    %v128 = vadd.f32 %v59, %v127
    %v129 = vpop.f32.mrf.mxu0
    %v130 = vadd.f32 %v55, %v129
    %v131 = vpop.f32.mrf.mxu0
    %v132 = vadd.f32 %v59, %v131
    %133 = vdwg.mxu0
    %v134 = vpack.c.bf16 %v130, %v126
    %v135 = vpack.c.bf16 %v132, %v128
    %v138 = vunpack.c.l.b16 %v134
    %v139 = vunpack.c.l.b16 %v135
    %v140 = vunpack.c.h.b16 %v134
    %v141 = vunpack.c.h.b16 %v135
    %v142 = vpack.c.b16 %v139, %v138
    %v143 = vpack.c.b16 %v141, %v140
    %146 = vst [vmem:[#allocation7] sm:$0xff] %v142
    %147 = vst [vmem:[#allocation7 + $0x8] sm:$0xff] %v143
    // Predicated region
    $region22: #{tpu_custom_call.1} parent=1 // pred_check
      _
    $region23: #{tpu_custom_call.1} parent=1 // pred_check_branch
      %149 = sbr.rel (0) target = $region25
    $region24: #{tpu_custom_call.1} parent=1 // pred_region
      %s151 = ssub.s32 256, 256
      %152 = vsyncadd [#allocation4], %s151
      %s153 = sshll.u32 [#allocation7], 4
      %s154 = int_to_ptr.vmem [resolvable:$true] %s153
      %159 = dma.vmem_to_hbm [thread:$0]  %s154, 256, %s3, [#allocation4], 128, 128, 8
    $region25: #{tpu_custom_call.1} parent=1 // pred_fallthru
      _
    // Predicated region
    $region26: #{tpu_custom_call.1} parent=1 // pred_check
      _
    $region27: #{tpu_custom_call.1} parent=1 // pred_check_branch
      %161 = sbr.rel (0) target = $region29
    $region28: #{tpu_custom_call.1} parent=1 // pred_region
      %162 = dma.done [#allocation4], 256
    $region29: #{tpu_custom_call.1} parent=1 // pred_fallthru
      _
    %163 = vsyncpa [#allocation3], 1
    %164 = vsyncpa [#allocation6], 1
    %165 = vsyncpa [#allocation4], 1

</llo_original>
